<compile_context>
chip_gen: v5e
topology: v5e:2x2
jax: 0.10.0
libtpu: 0.0.40
codegen_flags: <defaults>
</compile_context>

<pallas_src>
import math

import jax
import jax.numpy as jnp
from jax.experimental import pallas as pl
from jax.experimental.pallas import tpu as pltpu

_LOG2E = 1.4426950408889634


def _edge_embedding_kernel(d_ref, e_ref, c_ref, o_ref):
    """Gaussian filter hot path (lane-dense).

    d_ref : (TR, R)      f32 distances, R per output row
    e_ref : (3R, R*G)    bf16 0/1 selection matrix (hi/mid/lo chunks stacked)
    c_ref : (2, R*G)     row 0: tiled Gaussian centers, row 1: tiled -0.5*log2e/width^2
    o_ref : (TR, R*G)    exp2(neg_eta * (d - off)^2), native (N, G) flat layout
    """
    d = d_ref[...]                                    # (TR, R) f32
    # Exact 3-way bf16 split of f32 distances; the single bf16 MXU matmul with
    # the stacked selection matrix reconstructs d to ~1 ulp in the f32
    # accumulator while lane-repeating each distance G times.
    hi = d.astype(jnp.bfloat16)
    r1 = d - hi.astype(jnp.float32)
    mid = r1.astype(jnp.bfloat16)
    lo = (r1 - mid.astype(jnp.float32)).astype(jnp.bfloat16)
    lhs = jnp.concatenate([hi, mid, lo], axis=1)      # (TR, 3R) bf16

    d_rep = jnp.dot(lhs, e_ref[...],
                    preferred_element_type=jnp.float32)   # (TR, R*G) f32

    off = c_ref[0:1, :]                               # (1, R*G)
    neg_eta = c_ref[1:2, :]                           # (1, R*G), already * log2(e)
    diff = d_rep - off
    o_ref[...] = jnp.exp2(neg_eta * diff * diff).astype(o_ref.dtype)


def _pick_tile_rows(rows, requested=None, cap=1024):
    """Choose rows-per-grid-step.

    Megacore-aware (prefer >= 2 grid steps so v7x's two TensorCores both get
    work) and capped so the per-step VMEM working set stays well under every
    generation's default scoped limit (v5e: 16 MiB).
    """
    if requested is not None:
        tr = min(int(requested), rows)
        if tr < rows:
            tr = max(8, (tr // 8) * 8)    # block dim must be a multiple of 8
        return tr
    if rows <= 8:
        return rows                        # full-array block (any size allowed)
    half = -(-rows // 2)                   # cdiv(rows, 2)
    half = -(-half // 8) * 8               # round up to a multiple of 8
    return max(8, min(cap, half))


def _gaussian_filter_pallas(d2d, e_mat, consts, *, tile_rows, out_dtype):
    """d2d: (rows, R) f32; e_mat: (3R, R*G) bf16; consts: (2, R*G) f32."""
    rows, r = d2d.shape
    k3, rg = e_mat.shape
    grid = pl.cdiv(rows, tile_rows)

    # Explicit scoped-VMEM limit with headroom (review: v5e default is 16 MiB,
    # v6e 32 MiB, v7x 32/64 MiB); never ask for more than 48 MiB so v7x's
    # 64 MiB physical VMEM is respected.
    out_block_bytes = tile_rows * rg * jnp.dtype(out_dtype).itemsize
    vmem_limit = int(min(48 * 2**20, max(16 * 2**20, 8 * out_block_bytes)))

    return pl.pallas_call(
        _edge_embedding_kernel,
        out_shape=jax.ShapeDtypeStruct((rows, rg), out_dtype),
        grid_spec=pltpu.PrefetchScalarGridSpec(
            num_scalar_prefetch=0,
            grid=(grid,),
            in_specs=[
                pl.BlockSpec((tile_rows, r), lambda i: (i, 0)),
                pl.BlockSpec((k3, rg), lambda i: (0, 0)),   # resident constant
                pl.BlockSpec((2, rg), lambda i: (0, 0)),    # resident constant
            ],
            out_specs=pl.BlockSpec((tile_rows, rg), lambda i: (i, 0)),
        ),
        compiler_params=pltpu.CompilerParams(
            dimension_semantics=("parallel",),
            vmem_limit_bytes=vmem_limit,
        ),
    )(d2d, e_mat, consts)


class EdgeEmbedding:
    """JAX/Pallas port of the PyTorch EdgeEmbedding module."""

    def __init__(self, start: float = 0.0, stop: float = 6.0,
                 n_gaussian: int = 20, centered: bool = False,
                 trainable: bool = True) -> None:
        # Deterministic parameter init — mirrors torch.linspace / ones_like.
        offsets = jnp.linspace(start, stop, n_gaussian, dtype=jnp.float32)
        widths = (offsets[1] - offsets[0]) * jnp.ones_like(offsets)
        self.offset = offsets
        self.width = widths
        self.centered = centered
        self.n_gaussian = n_gaussian
        # `trainable` only affects Parameter registration in torch; forward
        # semantics are identical.

        g = n_gaussian
        # R chosen so the output row width R*G is an exact multiple of 128
        # lanes (unmasked vector stores).  G=20 -> R=32 -> 640 lanes.
        r = 128 // math.gcd(g, 128)
        self._r = r
        rg = r * g

        if centered:
            # NOTE: with start == 0, offset[0] == 0 -> eta == inf -> NaN in
            # that Gaussian; this exactly mirrors the PyTorch module.
            neg_eta = -0.5 / jnp.square(offsets)
            off_used = jnp.zeros_like(offsets)
        else:
            neg_eta = -0.5 / jnp.square(widths)
            off_used = offsets
        # Fold log2(e) so the kernel uses exp2 directly.
        neg_eta = neg_eta * jnp.float32(_LOG2E)
        # Packed (2, R*G) constant: row 0 = tiled centers, row 1 = tiled -eta*log2e.
        self._consts = jnp.stack(
            [jnp.tile(off_used, r), jnp.tile(neg_eta, r)]).astype(jnp.float32)
        # (3R, R*G) 0/1 selection matrix: rows [0,R) feed the bf16 "hi" chunk,
        # [R,2R) "mid", [2R,3R) "lo"; column j selects distance j // G.
        cols = jnp.arange(rg) // g
        e = (cols[None, :] == jnp.arange(r)[:, None])
        self._e_mat = jnp.concatenate([e, e, e], axis=0).astype(jnp.bfloat16)

    def __call__(self, distances: jnp.ndarray, *, tile_rows=None,
                 out_dtype=jnp.float32) -> jnp.ndarray:
        """distances: (B, At, Nbr) -> (B, At, Nbr, G).

        Pass out_dtype=jnp.bfloat16 on v6e/v7x to halve the dominant HBM-store
        traffic if downstream tolerates it (accuracy drops to ~bf16 level;
        default float32 matches the PyTorch module bit-for-bit intent).
        """
        b, at, nbr = distances.shape
        g = self.n_gaussian
        r = self._r
        n = b * at * nbr

        d_flat = distances.reshape(n).astype(jnp.float32)
        # Only R-alignment is required (Pallas clips the partial final block),
        # so shapes with N % R == 0 take the fully copy-free path.
        pad = (-n) % r
        if pad:
            d_flat = jnp.pad(d_flat, (0, pad))
        rows = (n + pad) // r

        tr = _pick_tile_rows(rows, tile_rows)
        out2d = _gaussian_filter_pallas(
            d_flat.reshape(rows, r), self._e_mat, self._consts,
            tile_rows=tr, out_dtype=out_dtype)

        out_flat = out2d.reshape(-1)          # same linear layout as (N_pad, G)
        if pad:
            # TODO(synk): this slice re-copies the 20x-expanded output; shapes
            # with B*At*Nbr % R == 0 stay on the copy-free path.
            out_flat = out_flat[: n * g]
        return out_flat.reshape(b, at, nbr, g)


def _reference(distances, offsets, widths, centered=False):
    """Pure-JAX reference replicating the PyTorch gaussian_filter."""
    if centered:
        eta = 0.5 / jnp.square(offsets)
        diff = distances[:, :, :, None]
    else:
        eta = 0.5 / jnp.square(widths)
        diff = distances[:, :, :, None] - offsets[None, None, None, :]
    return jnp.exp(-eta * jnp.square(diff))


if __name__ == "__main__":
    key = jax.random.PRNGKey(0)
    k1, k2 = jax.random.split(key)

    module = EdgeEmbedding(start=0.0, stop=6.0, n_gaussian=20,
                           centered=False, trainable=True)

    # 1) Aligned (copy-free) shape: N = 2*8*16 = 256 distances -> 8 rows of 32.
    B, At, Nbr = 2, 8, 16
    d1 = jax.random.uniform(k1, (B, At, Nbr), dtype=jnp.float32,
                            minval=0.0, maxval=6.0)
    out1 = jax.block_until_ready(module(d1))
    ref1 = _reference(d1, module.offset, module.width, centered=False)
    assert out1.shape == (B, At, Nbr, 20), out1.shape
    assert jnp.allclose(out1, ref1, atol=1e-5, rtol=1e-5), "mismatch (aligned)"

    # 2) Unaligned tail + multi-step grid (partial final block + slice path):
    #    N = 1*41*16 = 656 distances -> 21 rows, tile_rows=16, grid=2.
    d2 = jax.random.uniform(k2, (1, 41, 16), dtype=jnp.float32,
                            minval=0.0, maxval=6.0)
    out2 = jax.block_until_ready(module(d2))
    ref2 = _reference(d2, module.offset, module.width, centered=False)
    assert out2.shape == (1, 41, 16, 20), out2.shape
    assert jnp.allclose(out2, ref2, atol=1e-5, rtol=1e-5), "mismatch (unaligned)"

    print("KERNEL_OK")
</pallas_src>

<mosaic_0001>
module attributes {stable_mosaic.version = 11 : i64} {
  func.func @_edge_embedding_kernel(%arg0: i32, %arg1: memref<8x32xf32, #tpu.memory_space<vmem>>, %arg2: memref<96x640xbf16, #tpu.memory_space<vmem>>, %arg3: memref<2x640xf32, #tpu.memory_space<vmem>>, %arg4: memref<8x640xf32, #tpu.memory_space<vmem>>) attributes {dimension_semantics = [#tpu.dimension_semantics<parallel>], iteration_bounds = array<i64: 1>, scalar_prefetch = 0 : i64, scratch_operands = 0 : i64, tpu.core_type = #tpu.core_type<tc>, window_params = [{transform_indices = @transform_0, window_bounds = array<i64: 8, 32>}, {pipeline_mode = #tpu.pipeline_mode<synchronous>, transform_indices = @transform_1, window_bounds = array<i64: 96, 640>}, {pipeline_mode = #tpu.pipeline_mode<synchronous>, transform_indices = @transform_2, window_bounds = array<i64: 2, 640>}, {transform_indices = @transform_3, window_bounds = array<i64: 8, 640>}]} {
    %c0 = arith.constant 0 : index
    %c0_0 = arith.constant 0 : index
    %0 = vector.load %arg1[%c0, %c0_0] : memref<8x32xf32, #tpu.memory_space<vmem>>, vector<8x32xf32>
    %1 = arith.truncf %0 : vector<8x32xf32> to vector<8x32xbf16>
    %2 = arith.extf %1 : vector<8x32xbf16> to vector<8x32xf32>
    %3 = arith.subf %0, %2 : vector<8x32xf32>
    %4 = arith.truncf %3 : vector<8x32xf32> to vector<8x32xbf16>
    %5 = arith.extf %4 : vector<8x32xbf16> to vector<8x32xf32>
    %6 = arith.subf %3, %5 : vector<8x32xf32>
    %7 = arith.truncf %6 : vector<8x32xf32> to vector<8x32xbf16>
    %8 = tpu.concatenate %1, %4, %7 in 1 : vector<8x32xbf16>, vector<8x32xbf16>, vector<8x32xbf16> -> vector<8x96xbf16>
    %c0_1 = arith.constant 0 : index
    %c0_2 = arith.constant 0 : index
    %9 = vector.load %arg2[%c0_1, %c0_2] : memref<96x640xbf16, #tpu.memory_space<vmem>>, vector<96x640xbf16>
    %cst = arith.constant dense<0.000000e+00> : vector<8x640xf32>
    %10 = tpu.matmul %8, %9, %cst {dimension_numbers = #tpu.dot_dimension_numbers<[1], [0], [0], [1], [0, 0, 1, 1], [], []>} : vector<8x96xbf16>, vector<96x640xbf16>, vector<8x640xf32> -> vector<8x640xf32>
    %c0_3 = arith.constant 0 : index
    %c0_4 = arith.constant 0 : index
    %11 = vector.load %arg3[%c0_3, %c0_4] : memref<2x640xf32, #tpu.memory_space<vmem>>, vector<1x640xf32>
    %c1 = arith.constant 1 : index
    %c0_5 = arith.constant 0 : index
    %12 = vector.load %arg3[%c1, %c0_5] : memref<2x640xf32, #tpu.memory_space<vmem>>, vector<1x640xf32>
    %13 = vector.broadcast %11 : vector<1x640xf32> to vector<8x640xf32>
    %14 = arith.subf %10, %13 : vector<8x640xf32>
    %15 = vector.broadcast %12 : vector<1x640xf32> to vector<8x640xf32>
    %16 = arith.mulf %15, %14 : vector<8x640xf32>
    %17 = arith.mulf %16, %14 : vector<8x640xf32>
    %18 = math.exp2 %17 : vector<8x640xf32>
    %c0_6 = arith.constant 0 : index
    %c0_7 = arith.constant 0 : index
    %19 = vector.load %arg4[%c0_6, %c0_7] : memref<8x640xf32, #tpu.memory_space<vmem>>, vector<8x640xf32>
    tpu.vector_store %arg4[%c0_6, %c0_7], %18 {strides = array<i32>} : memref<8x640xf32, #tpu.memory_space<vmem>>, vector<8x640xf32>,
    return
  }
  func.func @transform_0(%arg0: i32) -> (i32, i32) {
    %c0_i32 = arith.constant 0 : i32
    %c0_i32_0 = arith.constant 0 : i32
    return %arg0, %c0_i32 : i32, i32
  }
  func.func @transform_1(%arg0: i32) -> (i32, i32) {
    %c0_i32 = arith.constant 0 : i32
    %c0_i32_0 = arith.constant 0 : i32
    %c0_i32_1 = arith.constant 0 : i32
    return %c0_i32, %c0_i32_0 : i32, i32
  }
  func.func @transform_2(%arg0: i32) -> (i32, i32) {
    %c0_i32 = arith.constant 0 : i32
    %c0_i32_0 = arith.constant 0 : i32
    %c0_i32_1 = arith.constant 0 : i32
    return %c0_i32, %c0_i32_0 : i32, i32
  }
  func.func @transform_3(%arg0: i32) -> (i32, i32) {
    %c0_i32 = arith.constant 0 : i32
    %c0_i32_0 = arith.constant 0 : i32
    return %arg0, %c0_i32 : i32, i32
  }
}

</mosaic_0001>

<llo_original>
// kernel: tpu_custom_call.1
$region0: #{tpu_custom_call.1}
  #allocation0 [shape = 'u32[]', space=smem, size = 0x4, offset = 0x4, fixed_abs, tag = 'smem constant byte address 0x4 - core index']
  #allocation1 [shape = 'u32[72,128]{1,0:T(1,128)}', space=vmem, size = 0x9000, scoped, tag = 'internal scratch']
  %s0 = inlined_call_operand.hbm [shape: f32[8,32], index: 0, kind: input, shape index: {}]
  %s1 = inlined_call_operand.hbm [shape: bf16[96,640], index: 1, kind: input, shape index: {}]
  %s2 = inlined_call_operand.hbm [shape: f32[2,640], index: 2, kind: input, shape index: {}]
  %s3 = inlined_call_operand.hbm [shape: f32[8,640], index: 3, kind: output, shape index: {}]
  %s4 = sld [smem:[#allocation0]]
  $region34: #{tpu_custom_call.1} parent=0
    _
  %s6 = ssub.s32 1, %s4
  %s7 = scalar_select 0, %s6, %s4
  $region1: #{tpu_custom_call.1} parent=0
    #allocation2 [shape = 'u8[4096]{0}', space=vmem, size = 0x1000, scoped, tag = 'input window, operand 0, single buffered']
    #allocation3 [shape = 's32[1]{0}', space=sflag, size = 0x4, scoped, tag = 'scoped memory for tpu_custom_call.1']
    #allocation4 [shape = 's32[1]{0}', space=sflag, size = 0x4, scoped, tag = 'scoped memory for tpu_custom_call.1']
    #allocation5 [shape = 'u8[122880]{0}', space=vmem, size = 0x1e000, scoped, tag = 'input window, operand 1, single buffered']
    #allocation6 [shape = 's32[1]{0}', space=sflag, size = 0x4, scoped, tag = 'scoped memory for tpu_custom_call.1']
    #allocation7 [shape = 'u8[5120]{0}', space=vmem, size = 0x1400, scoped, tag = 'input window, operand 2, single buffered']
    #allocation8 [shape = 'u8[20480]{0}', space=vmem, size = 0x5000, scoped, tag = 'output window, operand 0, single buffered']
    %8 = vsyncpa [#allocation3], 0
    %9 = vsyncpa [#allocation6], 0
    %10 = vsyncpa [#allocation4], 0
    // Predicated region
    $region2: #{tpu_custom_call.1} parent=1 // pred_check
      _
    $region3: #{tpu_custom_call.1} parent=1 // pred_check_branch
      %12 = sbr.rel (0) target = $region5
    $region4: #{tpu_custom_call.1} parent=1 // pred_region
      %14 = vsyncadd [#allocation3], 0
      %s16 = sshll.u32 %s0, 4
      %s17 = int_to_ptr.hbm [resolvable:$true] %s16
      %s18 = sshll.u32 [#allocation2], 4
      %s19 = int_to_ptr.vmem [resolvable:$true] %s18
      %21 = dma.hbm_to_vmem [thread:$0]  %s17, 128, %s19, [#allocation3]
    $region5: #{tpu_custom_call.1} parent=1 // pred_fallthru
      _
    // Predicated region
    $region6: #{tpu_custom_call.1} parent=1 // pred_check
      _
    $region7: #{tpu_custom_call.1} parent=1 // pred_check_branch
      %23 = sbr.rel (0) target = $region9
    $region8: #{tpu_custom_call.1} parent=1 // pred_region
      %25 = vsyncadd [#allocation6], 0
      %s26 = sshll.u32 %s1, 4
      %s27 = int_to_ptr.hbm [resolvable:$true] %s26
      %s28 = sshll.u32 [#allocation5], 4
      %s29 = int_to_ptr.vmem [resolvable:$true] %s28
      %34 = dma.hbm_to_vmem [thread:$0]  %s27, 3840, %s29, [#allocation6], 320, 320, 20
    $region9: #{tpu_custom_call.1} parent=1 // pred_fallthru
      _
    // Predicated region
    $region10: #{tpu_custom_call.1} parent=1 // pred_check
      _
    $region11: #{tpu_custom_call.1} parent=1 // pred_check_branch
      %36 = sbr.rel (0) target = $region13
    $region12: #{tpu_custom_call.1} parent=1 // pred_region
      %38 = vsyncadd [#allocation6], 0
      %s40 = sshll.u32 %s2, 4
      %s41 = int_to_ptr.hbm [resolvable:$true] %s40
      %s42 = sshll.u32 [#allocation7], 4
      %s43 = int_to_ptr.vmem [resolvable:$true] %s42
      %45 = dma.hbm_to_vmem [thread:$0]  %s41, 160, %s43, [#allocation6]
    $region13: #{tpu_custom_call.1} parent=1 // pred_fallthru
      _
    // Predicated region
    $region14: #{tpu_custom_call.1} parent=1 // pred_check
      _
    $region15: #{tpu_custom_call.1} parent=1 // pred_check_branch
      %47 = sbr.rel (0) target = $region17
    $region16: #{tpu_custom_call.1} parent=1 // pred_region
      %49 = dma.done [#allocation3], 128
    $region17: #{tpu_custom_call.1} parent=1 // pred_fallthru
      _
    // Predicated region
    $region18: #{tpu_custom_call.1} parent=1 // pred_check
      _
    $region19: #{tpu_custom_call.1} parent=1 // pred_check_branch
      %51 = sbr.rel (0) target = $region21
    $region20: #{tpu_custom_call.1} parent=1 // pred_region
      %53 = dma.done [#allocation6], 3840
    $region21: #{tpu_custom_call.1} parent=1 // pred_fallthru
      _
    // Predicated region
    $region22: #{tpu_custom_call.1} parent=1 // pred_check
      _
    $region23: #{tpu_custom_call.1} parent=1 // pred_check_branch
      %55 = sbr.rel (0) target = $region25
    $region24: #{tpu_custom_call.1} parent=1 // pred_region
      %57 = dma.done [#allocation6], 160
    $region25: #{tpu_custom_call.1} parent=1 // pred_fallthru
      _
    %v59 = vld [vmem:[#allocation2] sm:$0xff]
    %v60 = vpack.c.bf16 %v59, %v59
    %v61 = vunpack.c.l.bf16 %v60
    %v62 = vsub.f32 %v59, %v61
    %v63 = vpack.c.bf16 %v62, %v62
    %v64 = vunpack.c.l.bf16 %v63
    %v65 = vsub.f32 %v62, %v64
    %v66 = vpack.c.bf16 %v65, %v65
    %v68 = vunpack.c.l.b16 %v63
    %v69 = vpack.c.b16 %v68, %v68
    %70 = vrot.lane.b32.xlu0 %v69, 32
    %v71 = vpop.permute.xlu0 %70
    %v73 = vunpack.c.l.b16 %v66
    %v74 = vpack.c.b16 %v73, %v73
    %75 = vrot.lane.b32.xlu0 %v74, 64
    %v76 = vpop.permute.xlu0 %75
    %vm77 = vcmask 261120
    %v80 = vsel %vm77, %v60, %v71
    %vm81 = vcmask 523264
    %v83 = vsel %vm81, %v80, %v76
    %v84 = vld [vmem:[#allocation5] sm:$0xff]
    %v85 = vld [vmem:[#allocation5 + $0x8] sm:$0xff]
    %v86 = vld [vmem:[#allocation5 + $0x10] sm:$0xf]
    %v87 = vld [vmem:[#allocation5 + $0x14] sm:$0xff]
    %v88 = vld [vmem:[#allocation5 + $0x1c] sm:$0xff]
    %v89 = vld [vmem:[#allocation5 + $0x24] sm:$0xf]
    %v90 = vld [vmem:[#allocation5 + $0x28] sm:$0xff]
    %v91 = vld [vmem:[#allocation5 + $0x30] sm:$0xff]
    %v92 = vld [vmem:[#allocation5 + $0x38] sm:$0xf]
    %v93 = vld [vmem:[#allocation5 + $0x3c] sm:$0xff]
    %v94 = vld [vmem:[#allocation5 + $0x44] sm:$0xff]
    %v95 = vld [vmem:[#allocation5 + $0x4c] sm:$0xf]
    %v96 = vld [vmem:[#allocation5 + $0x50] sm:$0xff]
    %v97 = vld [vmem:[#allocation5 + $0x58] sm:$0xff]
    %v98 = vld [vmem:[#allocation5 + $0x60] sm:$0xf]
    %v99 = vld [vmem:[#allocation5 + $0x64] sm:$0xff]
    %v100 = vld [vmem:[#allocation5 + $0x6c] sm:$0xff]
    %v101 = vld [vmem:[#allocation5 + $0x74] sm:$0xf]
    %v102 = vld [vmem:[#allocation5 + $0x78] sm:$0xff]
    %v103 = vld [vmem:[#allocation5 + $0x80] sm:$0xff]
    %v104 = vld [vmem:[#allocation5 + $0x88] sm:$0xf]
    %v105 = vld [vmem:[#allocation5 + $0x8c] sm:$0xff]
    %v106 = vld [vmem:[#allocation5 + $0x94] sm:$0xff]
    %v107 = vld [vmem:[#allocation5 + $0x9c] sm:$0xf]
    %v108 = vld [vmem:[#allocation5 + $0xa0] sm:$0xff]
    %v109 = vld [vmem:[#allocation5 + $0xa8] sm:$0xff]
    %v110 = vld [vmem:[#allocation5 + $0xb0] sm:$0xf]
    %v111 = vld [vmem:[#allocation5 + $0xb4] sm:$0xff]
    %v112 = vld [vmem:[#allocation5 + $0xbc] sm:$0xff]
    %v113 = vld [vmem:[#allocation5 + $0xc4] sm:$0xf]
    %v114 = vld [vmem:[#allocation5 + $0xc8] sm:$0xff]
    %v115 = vld [vmem:[#allocation5 + $0xd0] sm:$0xff]
    %v116 = vld [vmem:[#allocation5 + $0xd8] sm:$0xf]
    %v117 = vld [vmem:[#allocation5 + $0xdc] sm:$0xff]
    %v118 = vld [vmem:[#allocation5 + $0xe4] sm:$0xff]
    %v119 = vld [vmem:[#allocation5 + $0xec] sm:$0xf]
    %v156 = vunpack.c.l.b16 %v84
    %v157 = vunpack.c.h.b16 %v84
    %v158 = vunpack.c.l.b16 %v85
    %v159 = vunpack.c.h.b16 %v85
    %v160 = vunpack.c.l.b16 %v86
    %v161 = vunpack.c.l.b16 %v87
    %v162 = vunpack.c.h.b16 %v87
    %v163 = vunpack.c.l.b16 %v88
    %v164 = vunpack.c.h.b16 %v88
    %v165 = vunpack.c.l.b16 %v89
    %v166 = vunpack.c.l.b16 %v90
    %v167 = vunpack.c.h.b16 %v90
    %v168 = vunpack.c.l.b16 %v91
    %v169 = vunpack.c.h.b16 %v91
    %v170 = vunpack.c.l.b16 %v92
    %v171 = vunpack.c.l.b16 %v93
    %v172 = vunpack.c.h.b16 %v93
    %v173 = vunpack.c.l.b16 %v94
    %v174 = vunpack.c.h.b16 %v94
    %v175 = vunpack.c.l.b16 %v95
    %v176 = vunpack.c.l.b16 %v96
    %v177 = vunpack.c.h.b16 %v96
    %v178 = vunpack.c.l.b16 %v97
    %v179 = vunpack.c.h.b16 %v97
    %v180 = vunpack.c.l.b16 %v98
    %v181 = vunpack.c.l.b16 %v99
    %v182 = vunpack.c.h.b16 %v99
    %v183 = vunpack.c.l.b16 %v100
    %v184 = vunpack.c.h.b16 %v100
    %v185 = vunpack.c.l.b16 %v101
    %v186 = vunpack.c.l.b16 %v102
    %v187 = vunpack.c.h.b16 %v102
    %v188 = vunpack.c.l.b16 %v103
    %v189 = vunpack.c.h.b16 %v103
    %v190 = vunpack.c.l.b16 %v104
    %v191 = vunpack.c.l.b16 %v105
    %v192 = vunpack.c.h.b16 %v105
    %v193 = vunpack.c.l.b16 %v106
    %v194 = vunpack.c.h.b16 %v106
    %v195 = vunpack.c.l.b16 %v107
    %v196 = vunpack.c.l.b16 %v108
    %v197 = vunpack.c.h.b16 %v108
    %v198 = vunpack.c.l.b16 %v109
    %v199 = vunpack.c.h.b16 %v109
    %v200 = vunpack.c.l.b16 %v110
    %v201 = vunpack.c.l.b16 %v111
    %v202 = vunpack.c.h.b16 %v111
    %v203 = vunpack.c.l.b16 %v112
    %v204 = vunpack.c.h.b16 %v112
    %v205 = vunpack.c.l.b16 %v113
    %v206 = vunpack.c.l.b16 %v114
    %v207 = vunpack.c.h.b16 %v114
    %v208 = vunpack.c.l.b16 %v115
    %v209 = vunpack.c.h.b16 %v115
    %v210 = vunpack.c.l.b16 %v116
    %v211 = vunpack.c.l.b16 %v117
    %v212 = vunpack.c.h.b16 %v117
    %v213 = vunpack.c.l.b16 %v118
    %v214 = vunpack.c.h.b16 %v118
    %v215 = vunpack.c.l.b16 %v119
    %v216 = vpack.c.b16 %v161, %v156
    %v217 = vpack.c.b16 %v162, %v157
    %v218 = vpack.c.b16 %v163, %v158
    %v219 = vpack.c.b16 %v164, %v159
    %v220 = vpack.c.b16 %v165, %v160
    %v221 = vpack.c.b16 %v171, %v166
    %v222 = vpack.c.b16 %v172, %v167
    %v223 = vpack.c.b16 %v173, %v168
    %v224 = vpack.c.b16 %v174, %v169
    %v225 = vpack.c.b16 %v175, %v170
    %v226 = vpack.c.b16 %v181, %v176
    %v227 = vpack.c.b16 %v182, %v177
    %v228 = vpack.c.b16 %v183, %v178
    %v229 = vpack.c.b16 %v184, %v179
    %v230 = vpack.c.b16 %v185, %v180
    %v231 = vpack.c.b16 %v191, %v186
    %v232 = vpack.c.b16 %v192, %v187
    %v233 = vpack.c.b16 %v193, %v188
    %v234 = vpack.c.b16 %v194, %v189
    %v235 = vpack.c.b16 %v195, %v190
    %v236 = vpack.c.b16 %v201, %v196
    %v237 = vpack.c.b16 %v202, %v197
    %v238 = vpack.c.b16 %v203, %v198
    %v239 = vpack.c.b16 %v204, %v199
    %v240 = vpack.c.b16 %v205, %v200
    %v241 = vpack.c.b16 %v211, %v206
    %v242 = vpack.c.b16 %v212, %v207
    %v243 = vpack.c.b16 %v213, %v208
    %v244 = vpack.c.b16 %v214, %v209
    %v245 = vpack.c.b16 %v215, %v210
    %vm276 = vcmask 785408
    %v277 = vsel %vm276, %v83, 0
    %279 = vmatpush.bf16.msra.mxu0 0
    %280 = vmatpush.bf16.msra.mxu0 0
    %281 = vmatpush.bf16.msra.mxu0 %v241
    %282 = vmatpush.bf16.msra.mxu0 %v236
    %283 = vmatpush.bf16.msra.mxu0 %v231
    %284 = vmatpush.bf16.msra.mxu0 %v226
    %285 = vmatpush.bf16.msra.mxu0 %v221
    %286 = vmatpush.bf16.msra.mxu0 %v216
    %287 = vmatmul.bf16.gmra.mxu0 %v277
    %v288 = vpop.f32.mrf.mxu0
    %v289 = vadd.f32 0.0, %v288
    %v290 = vpop.f32.mrf.mxu0
    %291 = vdwg.mxu0
    %292 = vmatpush.bf16.msra.mxu0 0
    %293 = vmatpush.bf16.msra.mxu0 0
    %294 = vmatpush.bf16.msra.mxu0 %v242
    %295 = vmatpush.bf16.msra.mxu0 %v237
    %296 = vmatpush.bf16.msra.mxu0 %v232
    %297 = vmatpush.bf16.msra.mxu0 %v227
    %298 = vmatpush.bf16.msra.mxu0 %v222
    %299 = vmatpush.bf16.msra.mxu0 %v217
    %300 = vmatmul.bf16.gmra.mxu0 %v277
    %v301 = vpop.f32.mrf.mxu0
    %v302 = vadd.f32 0.0, %v301
    %v303 = vpop.f32.mrf.mxu0
    %304 = vdwg.mxu0
    %305 = vmatpush.bf16.msra.mxu0 0
    %306 = vmatpush.bf16.msra.mxu0 0
    %307 = vmatpush.bf16.msra.mxu0 %v243
    %308 = vmatpush.bf16.msra.mxu0 %v238
    %309 = vmatpush.bf16.msra.mxu0 %v233
    %310 = vmatpush.bf16.msra.mxu0 %v228
    %311 = vmatpush.bf16.msra.mxu0 %v223
    %312 = vmatpush.bf16.msra.mxu0 %v218
    %313 = vmatmul.bf16.gmra.mxu0 %v277
    %v314 = vpop.f32.mrf.mxu0
    %v315 = vadd.f32 0.0, %v314
    %v316 = vpop.f32.mrf.mxu0
    %317 = vdwg.mxu0
    %318 = vmatpush.bf16.msra.mxu0 0
    %319 = vmatpush.bf16.msra.mxu0 0
    %320 = vmatpush.bf16.msra.mxu0 %v244
    %321 = vmatpush.bf16.msra.mxu0 %v239
    %322 = vmatpush.bf16.msra.mxu0 %v234
    %323 = vmatpush.bf16.msra.mxu0 %v229
    %324 = vmatpush.bf16.msra.mxu0 %v224
    %325 = vmatpush.bf16.msra.mxu0 %v219
    %326 = vmatmul.bf16.gmra.mxu0 %v277
    %v327 = vpop.f32.mrf.mxu0
    %v328 = vadd.f32 0.0, %v327
    %v329 = vpop.f32.mrf.mxu0
    %330 = vdwg.mxu0
    %331 = vmatpush.bf16.msra.mxu0 0
    %332 = vmatpush.bf16.msra.mxu0 0
    %333 = vmatpush.bf16.msra.mxu0 %v245
    %334 = vmatpush.bf16.msra.mxu0 %v240
    %335 = vmatpush.bf16.msra.mxu0 %v235
    %336 = vmatpush.bf16.msra.mxu0 %v230
    %337 = vmatpush.bf16.msra.mxu0 %v225
    %338 = vmatpush.bf16.msra.mxu0 %v220
    %339 = vmatmul.bf16.gmra.mxu0 %v277
    %v340 = vpop.f32.mrf.mxu0
    %v341 = vadd.f32 0.0, %v340
    %v342 = vpop.f32.mrf.mxu0
    %343 = vdwg.mxu0
    %v344 = vld [vmem:[#allocation7] ss:$2 sm:$0x1f]
    %s345 = scalar_lea.vmem [#allocation7], 1
    %v346 = vld [vmem:[%s345] ss:$2 sm:$0x1f]
    %v348 = vperm.slane %v344, 0
    %v349 = vperm.slane %v344, 1
    %v350 = vperm.slane %v344, 2
    %v351 = vperm.slane %v344, 3
    %v352 = vperm.slane %v344, 4
    %v358 = vsub.f32 %v289, %v348
    %v359 = vsub.f32 %v302, %v349
    %v360 = vsub.f32 %v315, %v350
    %v361 = vsub.f32 %v328, %v351
    %v362 = vsub.f32 %v341, %v352
    %v364 = vperm.slane %v346, 0
    %v365 = vperm.slane %v346, 1
    %v366 = vperm.slane %v346, 2
    %v367 = vperm.slane %v346, 3
    %v368 = vperm.slane %v346, 4
    %v374 = vmul.f32 %v364, %v358
    %v375 = vmul.f32 %v365, %v359
    %v376 = vmul.f32 %v366, %v360
    %v377 = vmul.f32 %v367, %v361
    %v378 = vmul.f32 %v368, %v362
    %v379 = vmul.f32 %v374, %v358
    %v380 = vmul.f32 %v375, %v359
    %v381 = vmul.f32 %v376, %v360
    %v382 = vmul.f32 %v377, %v361
    %v383 = vmul.f32 %v378, %v362
    %v384 = vpow.pop %v379
    %v385 = vpow.pop %v380
    %v386 = vpow.pop %v381
    %v387 = vpow.pop %v382
    %v388 = vpow.pop %v383
    %389 = vst [vmem:[#allocation8] sm:$0xff] %v384
    %390 = vst [vmem:[#allocation8 + $0x8] sm:$0xff] %v385
    %391 = vst [vmem:[#allocation8 + $0x10] sm:$0xff] %v386
    %392 = vst [vmem:[#allocation8 + $0x18] sm:$0xff] %v387
    %393 = vst [vmem:[#allocation8 + $0x20] sm:$0xff] %v388
    // Predicated region
    $region26: #{tpu_custom_call.1} parent=1 // pred_check
      _
    $region27: #{tpu_custom_call.1} parent=1 // pred_check_branch
      %395 = sbr.rel (0) target = $region29
    $region28: #{tpu_custom_call.1} parent=1 // pred_region
      %397 = vsyncadd [#allocation4], 0
      %s399 = sshll.u32 [#allocation8], 4
      %s400 = int_to_ptr.vmem [resolvable:$true] %s399
      %s401 = sshll.u32 %s3, 4
      %s402 = int_to_ptr.hbm [resolvable:$true] %s401
      %404 = dma.vmem_to_hbm [thread:$0]  %s400, 640, %s402, [#allocation4]
    $region29: #{tpu_custom_call.1} parent=1 // pred_fallthru
      _
    // Predicated region
    $region30: #{tpu_custom_call.1} parent=1 // pred_check
      _
    $region31: #{tpu_custom_call.1} parent=1 // pred_check_branch
      %406 = sbr.rel (0) target = $region33
    $region32: #{tpu_custom_call.1} parent=1 // pred_region
      %408 = dma.done [#allocation4], 640
    $region33: #{tpu_custom_call.1} parent=1 // pred_fallthru
      _
    %409 = vsyncpa [#allocation3], 1
    %410 = vsyncpa [#allocation6], 1
    %411 = vsyncpa [#allocation4], 1

</llo_original>
